<compile_context>
chip_gen: v6e
topology: v6e:2x2x1
jax: 0.10.0
libtpu: 0.0.40
codegen_flags: <defaults>
</compile_context>

<pallas_src>
import jax
import jax.numpy as jnp
from jax import lax
from jax.experimental import pallas as pl
from jax.experimental.pallas import tpu as pltpu


def _make_mmd_tile_kernel(num_modalities: int):
    """Kernel factory; num_modalities is baked in (pre-scales the K_xx term)."""
    m_scale = float(num_modalities)

    def kernel(xq_ref, xk_ref, yq_ref, yk_ref,
               hxq_ref, hxk_ref, hyq_ref, hyk_ref, out_ref):
        m = pl.program_id(1)
        ki = pl.program_id(2)

        # The (TQ, 1) output block is resident across the (m, ki) reduction
        # axes: init once per row tile, accumulate raw kernel sums.
        @pl.when(jnp.logical_and(m == 0, ki == 0))
        def _():
            out_ref[...] = jnp.zeros_like(out_ref)

        xq = xq_ref[...]      # (TQ, D)  rows of x
        yq = yq_ref[0]        # (TQ, D)  rows of y_m
        yk = yk_ref[0]        # (TN, D)  cols of y_m

        hxq = hxq_ref[...]    # (TQ, 1)  0.5*||x_i||^2   (precomputed, f32)
        hxk = hxk_ref[...]    # (1, TN)
        hyq = hyq_ref[0]      # (TQ, 1)
        hyk = hyk_ref[0]      # (1, TN)

        tn = yk.shape[0]
        ones_col = jnp.ones((tn, 1), jnp.float32)

        def gram(a, b):
            # a @ b.T contracting the last dims of both operands: no transpose,
            # native-dtype MXU operands, f32 accumulation.
            return lax.dot_general(a, b, (((1,), (1,)), ((), ())),
                                   preferred_element_type=jnp.float32)

        def row_sums(a, ha_col, b, hb_row):
            # sum_j exp(-0.5*||a_i - b_j||^2) per row i -> (R, 1) f32.
            # Constants folded: exponent = a.b - 0.5||a||^2 - 0.5||b||^2 <= 0;
            # clamp kills +eps from cancellation before exp.
            expo = gram(a, b) - ha_col - hb_row
            k = jnp.exp(jnp.minimum(expo, 0.0))
            # Matrix->row reduction on the MXU (matvec vs. ones) instead of a
            # cross-lane VPU/XLU reduce.
            return lax.dot_general(k, ones_col, (((1,), (0,)), ((), ())),
                                   preferred_element_type=jnp.float32)

        partial = (row_sums(yq, hyq, yk, hyk)
                   - 2.0 * row_sums(xq, hxq, yk, hyk))

        @pl.when(m == 0)
        def _():
            # K_xx term: computed once (at m == 0) per (qi, ki) tile and
            # pre-scaled by M.  Because the parallel axis is qi, this extra
            # work is spread evenly across TensorCores.
            xk = xk_ref[...]   # (TN, D) cols of x
            out_ref[...] += partial + m_scale * row_sums(xq, hxq, xk, hxk)

        @pl.when(m != 0)
        def _():
            out_ref[...] += partial

    return kernel


def _pick_tile(batch: int, target: int) -> int:
    """Largest MXU/lane-friendly tile <= target that divides batch."""
    if batch <= target:
        return batch
    for t in (512, 384, 256, 128):
        if t <= target and batch % t == 0:
            return t
    # TODO(synk): pad + mask for batch sizes with no 128-multiple divisor;
    # falling back to a single (batch x batch) distance tile per modality.
    return batch


def _vmem_limit_bytes() -> int:
    """Explicit VMEM budget: ~75% of physical, capped at 100 MiB."""
    try:
        cap = int(pltpu.get_tpu_info().vmem_capacity_bytes)
    except Exception:
        cap = 64 << 20          # v7x per-core physical VMEM (most restrictive)
    return min((cap * 3) // 4, 100 << 20)   # ~48 MiB on v7x, ~96 MiB on v5e/v6e


def invariance_regularizer(unified_repr, modal_features_stacked, *,
                           tq=None, tn=None):
    """unified_repr: (B, D); modal_features_stacked: (M, B, D). Returns scalar."""
    B, D = unified_repr.shape
    M = modal_features_stacked.shape[0]

    # Tile sizes: 512 is a multiple of 256 (v6e/v7x MXU-native) and of 128
    # (v5e); 512x512 f32 distance tiles plus double-buffered (tile, D) inputs
    # stay well under the ~48 MiB budget derived for v7x's 64 MiB VMEM.
    if tq is None:
        tq = _pick_tile(B, 512)
    if tn is None:
        tn = _pick_tile(B, 512)
    assert B % tq == 0 and B % tn == 0, (B, tq, tn)

    # Half squared norms in both orientations, hoisted out of the kernel so
    # the inner loop never transposes (B, 1) vectors on the XLU.
    xf = unified_repr.astype(jnp.float32)
    yf = modal_features_stacked.astype(jnp.float32)
    hx_col = 0.5 * jnp.sum(xf * xf, axis=-1, keepdims=True)       # (B, 1)
    hx_row = jnp.swapaxes(hx_col, 0, 1)                           # (1, B)
    hy_col = 0.5 * jnp.sum(yf * yf, axis=-1, keepdims=True)       # (M, B, 1)
    hy_row = jnp.swapaxes(hy_col, 1, 2)                           # (M, 1, B)

    grid = (B // tq, M, B // tn)   # (parallel row tiles, modality, col tiles)

    itemsize = jnp.dtype(unified_repr.dtype).itemsize
    n_grams = 2 * M + 1
    cost = pl.CostEstimate(
        flops=int(2 * B * B * D * n_grams + 6 * B * B * n_grams),
        transcendentals=int(B * B * n_grams),
        bytes_accessed=int((M + 1) * B * D * itemsize
                           + 2 * (M + 1) * B * 4 + B * 4),
    )

    row_partials = pl.pallas_call(
        _make_mmd_tile_kernel(M),
        out_shape=jax.ShapeDtypeStruct((B, 1), jnp.float32),
        grid_spec=pltpu.PrefetchScalarGridSpec(
            num_scalar_prefetch=0,
            grid=grid,
            in_specs=[
                pl.BlockSpec((tq, D), lambda qi, m, ki: (qi, 0)),         # x rows
                pl.BlockSpec((tn, D), lambda qi, m, ki: (ki, 0)),         # x cols
                pl.BlockSpec((1, tq, D), lambda qi, m, ki: (m, qi, 0)),   # y rows
                pl.BlockSpec((1, tn, D), lambda qi, m, ki: (m, ki, 0)),   # y cols
                pl.BlockSpec((tq, 1), lambda qi, m, ki: (qi, 0)),         # 0.5|x|^2 col
                pl.BlockSpec((1, tn), lambda qi, m, ki: (0, ki)),         # 0.5|x|^2 row
                pl.BlockSpec((1, tq, 1), lambda qi, m, ki: (m, qi, 0)),   # 0.5|y|^2 col
                pl.BlockSpec((1, 1, tn), lambda qi, m, ki: (m, 0, ki)),   # 0.5|y|^2 row
            ],
            out_specs=pl.BlockSpec((tq, 1), lambda qi, m, ki: (qi, 0)),
        ),
        compiler_params=pltpu.CompilerParams(
            dimension_semantics=("parallel", "arbitrary", "arbitrary"),
            vmem_limit_bytes=_vmem_limit_bytes(),
        ),
        cost_estimate=cost,
    )(unified_repr, unified_repr,
      modal_features_stacked, modal_features_stacked,
      hx_col, hx_row, hy_col, hy_row)

    # Single 1/B^2 scaling (the "mean") applied once at the end.
    return jnp.sum(row_partials) / jnp.float32(B * B)


def invariance_regularizer_from_dict(unified_repr, modal_features_dict):
    """Convenience wrapper mirroring the PyTorch dict-of-modalities API."""
    stacked = jnp.stack(list(modal_features_dict.values()), axis=0)
    return invariance_regularizer(unified_repr, stacked)


def _reference_mmd_loss(unified_repr, modal_features_stacked):
    """Plain-JAX reference for the same RBF-MMD^2 sum (sanity check)."""
    x = unified_repr.astype(jnp.float32)

    def mmd2(y):
        y = y.astype(jnp.float32)

        def sqd(a, b):
            a2 = jnp.sum(a * a, -1, keepdims=True)
            b2 = jnp.sum(b * b, -1, keepdims=True)
            return jnp.maximum(a2 + b2.T - 2.0 * a @ b.T, 0.0)

        k = lambda d: jnp.exp(-0.5 * d)
        return (jnp.mean(k(sqd(x, x))) + jnp.mean(k(sqd(y, y)))
                - 2.0 * jnp.mean(k(sqd(x, y))))

    return jnp.sum(jax.vmap(mmd2)(modal_features_stacked))


if __name__ == "__main__":
    key = jax.random.PRNGKey(0)
    k_u, k_m, k_u2, k_m2 = jax.random.split(key, 4)

    # Case 1: tiny shapes consistent with the module (single distance tile).
    B, D, M = 8, 32, 3
    unified = jax.random.normal(k_u, (B, D), dtype=jnp.float32)
    modal = jax.random.normal(k_m, (M, B, D), dtype=jnp.float32)

    loss = jax.block_until_ready(invariance_regularizer(unified, modal))
    ref = _reference_mmd_loss(unified, modal)
    assert jnp.allclose(loss, ref, rtol=1e-4, atol=1e-5), (loss, ref)

    # Case 2: exercises the tiled (qi, m, ki) grid (2 x 2 x 2 distance tiles).
    B2, D2, M2 = 256, 64, 2
    unified2 = jax.random.normal(k_u2, (B2, D2), dtype=jnp.float32)
    modal2 = jax.random.normal(k_m2, (M2, B2, D2), dtype=jnp.float32)

    loss2 = jax.block_until_ready(
        invariance_regularizer(unified2, modal2, tq=128, tn=128))
    ref2 = _reference_mmd_loss(unified2, modal2)
    assert jnp.allclose(loss2, ref2, rtol=1e-4, atol=1e-4), (loss2, ref2)

    print("KERNEL_OK")
</pallas_src>

<mosaic_0001>
module attributes {stable_mosaic.version = 11 : i64} {
  func.func @kernel(%arg0: i32, %arg1: i32, %arg2: i32, %arg3: memref<8x32xf32, #tpu.memory_space<vmem>>, %arg4: memref<8x32xf32, #tpu.memory_space<vmem>>, %arg5: memref<1x8x32xf32, #tpu.memory_space<vmem>>, %arg6: memref<1x8x32xf32, #tpu.memory_space<vmem>>, %arg7: memref<8x1xf32, #tpu.memory_space<vmem>>, %arg8: memref<1x8xf32, #tpu.memory_space<vmem>>, %arg9: memref<1x8x1xf32, #tpu.memory_space<vmem>>, %arg10: memref<1x1x8xf32, #tpu.memory_space<vmem>>, %arg11: memref<8x1xf32, #tpu.memory_space<vmem>>) attributes {dimension_semantics = [#tpu.dimension_semantics<parallel>, #tpu.dimension_semantics<arbitrary>, #tpu.dimension_semantics<arbitrary>], iteration_bounds = array<i64: 1, 3, 1>, scalar_prefetch = 0 : i64, scratch_operands = 0 : i64, tpu.core_type = #tpu.core_type<tc>, window_params = [{transform_indices = @transform_0, window_bounds = array<i64: 8, 32>}, {transform_indices = @transform_1, window_bounds = array<i64: 8, 32>}, {transform_indices = @transform_2, window_bounds = array<i64: 1, 8, 32>}, {transform_indices = @transform_3, window_bounds = array<i64: 1, 8, 32>}, {transform_indices = @transform_4, window_bounds = array<i64: 8, 1>}, {transform_indices = @transform_5, window_bounds = array<i64: 1, 8>}, {transform_indices = @transform_6, window_bounds = array<i64: 1, 8, 1>}, {transform_indices = @transform_7, window_bounds = array<i64: 1, 1, 8>}, {transform_indices = @transform_8, window_bounds = array<i64: 8, 1>}]} {
    %c0_i32 = arith.constant 0 : i32
    %0 = arith.cmpi eq, %arg1, %c0_i32 : i32
    %c0_i32_0 = arith.constant 0 : i32
    %1 = arith.cmpi eq, %arg2, %c0_i32_0 : i32
    %2 = arith.andi %0, %1 : i1
    %3 = arith.extui %2 : i1 to i32
    %c0_i32_1 = arith.constant 0 : i32
    %4 = arith.cmpi ne, %3, %c0_i32_1 : i32
    scf.if %4 {
      %cst_30 = arith.constant 0.000000e+00 : f32
      %44 = vector.broadcast %cst_30 : f32 to vector<8x1xf32>
      %c0_31 = arith.constant 0 : index
      %c0_32 = arith.constant 0 : index
      %45 = vector.load %arg11[%c0_31, %c0_32] : memref<8x1xf32, #tpu.memory_space<vmem>>, vector<8x1xf32>
      tpu.vector_store %arg11[%c0_31, %c0_32], %44 {strides = array<i32>} : memref<8x1xf32, #tpu.memory_space<vmem>>, vector<8x1xf32>,
    } else {
    }
    %c0 = arith.constant 0 : index
    %c0_2 = arith.constant 0 : index
    %5 = vector.load %arg3[%c0, %c0_2] : memref<8x32xf32, #tpu.memory_space<vmem>>, vector<8x32xf32>
    %c0_3 = arith.constant 0 : index
    %c0_4 = arith.constant 0 : index
    %c0_5 = arith.constant 0 : index
    %6 = vector.load %arg5[%c0_3, %c0_4, %c0_5] : memref<1x8x32xf32, #tpu.memory_space<vmem>>, vector<1x8x32xf32>
    %7 = vector.shape_cast %6 : vector<1x8x32xf32> to vector<8x32xf32>
    %c0_6 = arith.constant 0 : index
    %c0_7 = arith.constant 0 : index
    %c0_8 = arith.constant 0 : index
    %8 = vector.load %arg6[%c0_6, %c0_7, %c0_8] : memref<1x8x32xf32, #tpu.memory_space<vmem>>, vector<1x8x32xf32>
    %9 = vector.shape_cast %8 : vector<1x8x32xf32> to vector<8x32xf32>
    %c0_9 = arith.constant 0 : index
    %c0_10 = arith.constant 0 : index
    %10 = vector.load %arg7[%c0_9, %c0_10] : memref<8x1xf32, #tpu.memory_space<vmem>>, vector<8x1xf32>
    %c0_11 = arith.constant 0 : index
    %c0_12 = arith.constant 0 : index
    %11 = vector.load %arg8[%c0_11, %c0_12] : memref<1x8xf32, #tpu.memory_space<vmem>>, vector<1x8xf32>
    %c0_13 = arith.constant 0 : index
    %c0_14 = arith.constant 0 : index
    %c0_15 = arith.constant 0 : index
    %12 = vector.load %arg9[%c0_13, %c0_14, %c0_15] : memref<1x8x1xf32, #tpu.memory_space<vmem>>, vector<1x8x1xf32>
    %13 = vector.shape_cast %12 : vector<1x8x1xf32> to vector<8x1xf32>
    %c0_16 = arith.constant 0 : index
    %c0_17 = arith.constant 0 : index
    %c0_18 = arith.constant 0 : index
    %14 = vector.load %arg10[%c0_16, %c0_17, %c0_18] : memref<1x1x8xf32, #tpu.memory_space<vmem>>, vector<1x1x8xf32>
    %15 = vector.shape_cast %14 : vector<1x1x8xf32> to vector<1x8xf32>
    %cst = arith.constant 1.000000e+00 : f32
    %16 = vector.broadcast %cst : f32 to vector<8x1xf32>
    %cst_19 = arith.constant dense<0.000000e+00> : vector<8x8xf32>
    %17 = tpu.matmul %7, %9, %cst_19 {dimension_numbers = #tpu.dot_dimension_numbers<[1], [1], [0], [0], [0, 0, 1, 0], [], []>} : vector<8x32xf32>, vector<8x32xf32>, vector<8x8xf32> -> vector<8x8xf32>
    %18 = vector.broadcast %13 : vector<8x1xf32> to vector<8x8xf32>
    %19 = arith.subf %17, %18 : vector<8x8xf32>
    %20 = vector.broadcast %15 : vector<1x8xf32> to vector<8x8xf32>
    %21 = arith.subf %19, %20 : vector<8x8xf32>
    %cst_20 = arith.constant 0.000000e+00 : f32
    %22 = vector.broadcast %cst_20 : f32 to vector<8x8xf32>
    %23 = arith.minimumf %21, %22 : vector<8x8xf32>
    %24 = math.exp %23 : vector<8x8xf32>
    %cst_21 = arith.constant dense<0.000000e+00> : vector<8x1xf32>
    %25 = tpu.matmul %24, %16, %cst_21 {dimension_numbers = #tpu.dot_dimension_numbers<[1], [0], [0], [1], [0, 0, 1, 1], [], []>} : vector<8x8xf32>, vector<8x1xf32>, vector<8x1xf32> -> vector<8x1xf32>
    %cst_22 = arith.constant dense<0.000000e+00> : vector<8x8xf32>
    %26 = tpu.matmul %5, %9, %cst_22 {dimension_numbers = #tpu.dot_dimension_numbers<[1], [1], [0], [0], [0, 0, 1, 0], [], []>} : vector<8x32xf32>, vector<8x32xf32>, vector<8x8xf32> -> vector<8x8xf32>
    %27 = vector.broadcast %10 : vector<8x1xf32> to vector<8x8xf32>
    %28 = arith.subf %26, %27 : vector<8x8xf32>
    %29 = vector.broadcast %15 : vector<1x8xf32> to vector<8x8xf32>
    %30 = arith.subf %28, %29 : vector<8x8xf32>
    %cst_23 = arith.constant 0.000000e+00 : f32
    %31 = vector.broadcast %cst_23 : f32 to vector<8x8xf32>
    %32 = arith.minimumf %30, %31 : vector<8x8xf32>
    %33 = math.exp %32 : vector<8x8xf32>
    %cst_24 = arith.constant dense<0.000000e+00> : vector<8x1xf32>
    %34 = tpu.matmul %33, %16, %cst_24 {dimension_numbers = #tpu.dot_dimension_numbers<[1], [0], [0], [1], [0, 0, 1, 1], [], []>} : vector<8x8xf32>, vector<8x1xf32>, vector<8x1xf32> -> vector<8x1xf32>
    %cst_25 = arith.constant 2.000000e+00 : f32
    %35 = vector.broadcast %cst_25 : f32 to vector<8x1xf32>
    %36 = arith.mulf %35, %34 : vector<8x1xf32>
    %37 = arith.subf %25, %36 : vector<8x1xf32>
    %c0_i32_26 = arith.constant 0 : i32
    %38 = arith.cmpi eq, %arg1, %c0_i32_26 : i32
    %39 = arith.extui %38 : i1 to i32
    %c0_i32_27 = arith.constant 0 : i32
    %40 = arith.cmpi ne, %39, %c0_i32_27 : i32
    scf.if %40 {
      %c0_30 = arith.constant 0 : index
      %c0_31 = arith.constant 0 : index
      %44 = vector.load %arg4[%c0_30, %c0_31] : memref<8x32xf32, #tpu.memory_space<vmem>>, vector<8x32xf32>
      %c0_32 = arith.constant 0 : index
      %c0_33 = arith.constant 0 : index
      %45 = vector.load %arg11[%c0_32, %c0_33] : memref<8x1xf32, #tpu.memory_space<vmem>>, vector<8x1xf32>
      %cst_34 = arith.constant dense<0.000000e+00> : vector<8x8xf32>
      %46 = tpu.matmul %5, %44, %cst_34 {dimension_numbers = #tpu.dot_dimension_numbers<[1], [1], [0], [0], [0, 0, 1, 0], [], []>} : vector<8x32xf32>, vector<8x32xf32>, vector<8x8xf32> -> vector<8x8xf32>
      %47 = vector.broadcast %10 : vector<8x1xf32> to vector<8x8xf32>
      %48 = arith.subf %46, %47 : vector<8x8xf32>
      %49 = vector.broadcast %11 : vector<1x8xf32> to vector<8x8xf32>
      %50 = arith.subf %48, %49 : vector<8x8xf32>
      %cst_35 = arith.constant 0.000000e+00 : f32
      %51 = vector.broadcast %cst_35 : f32 to vector<8x8xf32>
      %52 = arith.minimumf %50, %51 : vector<8x8xf32>
      %53 = math.exp %52 : vector<8x8xf32>
      %cst_36 = arith.constant dense<0.000000e+00> : vector<8x1xf32>
      %54 = tpu.matmul %53, %16, %cst_36 {dimension_numbers = #tpu.dot_dimension_numbers<[1], [0], [0], [1], [0, 0, 1, 1], [], []>} : vector<8x8xf32>, vector<8x1xf32>, vector<8x1xf32> -> vector<8x1xf32>
      %cst_37 = arith.constant 3.000000e+00 : f32
      %55 = vector.broadcast %cst_37 : f32 to vector<8x1xf32>
      %56 = arith.mulf %55, %54 : vector<8x1xf32>
      %57 = arith.addf %37, %56 : vector<8x1xf32>
      %58 = arith.addf %45, %57 : vector<8x1xf32>
      %c0_38 = arith.constant 0 : index
      %c0_39 = arith.constant 0 : index
      %59 = vector.load %arg11[%c0_38, %c0_39] : memref<8x1xf32, #tpu.memory_space<vmem>>, vector<8x1xf32>
      tpu.vector_store %arg11[%c0_38, %c0_39], %58 {strides = array<i32>} : memref<8x1xf32, #tpu.memory_space<vmem>>, vector<8x1xf32>,
    } else {
    }
    %c0_i32_28 = arith.constant 0 : i32
    %41 = arith.cmpi ne, %arg1, %c0_i32_28 : i32
    %42 = arith.extui %41 : i1 to i32
    %c0_i32_29 = arith.constant 0 : i32
    %43 = arith.cmpi ne, %42, %c0_i32_29 : i32
    scf.if %43 {
      %c0_30 = arith.constant 0 : index
      %c0_31 = arith.constant 0 : index
      %44 = vector.load %arg11[%c0_30, %c0_31] : memref<8x1xf32, #tpu.memory_space<vmem>>, vector<8x1xf32>
      %45 = arith.addf %44, %37 : vector<8x1xf32>
      %c0_32 = arith.constant 0 : index
      %c0_33 = arith.constant 0 : index
      %46 = vector.load %arg11[%c0_32, %c0_33] : memref<8x1xf32, #tpu.memory_space<vmem>>, vector<8x1xf32>
      tpu.vector_store %arg11[%c0_32, %c0_33], %45 {strides = array<i32>} : memref<8x1xf32, #tpu.memory_space<vmem>>, vector<8x1xf32>,
    } else {
    }
    return
  }
  func.func @transform_0(%arg0: i32, %arg1: i32, %arg2: i32) -> (i32, i32) {
    %c0_i32 = arith.constant 0 : i32
    %c0_i32_0 = arith.constant 0 : i32
    return %arg0, %c0_i32 : i32, i32
  }
  func.func @transform_1(%arg0: i32, %arg1: i32, %arg2: i32) -> (i32, i32) {
    %c0_i32 = arith.constant 0 : i32
    %c0_i32_0 = arith.constant 0 : i32
    return %arg2, %c0_i32 : i32, i32
  }
  func.func @transform_2(%arg0: i32, %arg1: i32, %arg2: i32) -> (i32, i32, i32) {
    %c0_i32 = arith.constant 0 : i32
    %c0_i32_0 = arith.constant 0 : i32
    return %arg1, %arg0, %c0_i32 : i32, i32, i32
  }
  func.func @transform_3(%arg0: i32, %arg1: i32, %arg2: i32) -> (i32, i32, i32) {
    %c0_i32 = arith.constant 0 : i32
    %c0_i32_0 = arith.constant 0 : i32
    return %arg1, %arg2, %c0_i32 : i32, i32, i32
  }
  func.func @transform_4(%arg0: i32, %arg1: i32, %arg2: i32) -> (i32, i32) {
    %c0_i32 = arith.constant 0 : i32
    %c0_i32_0 = arith.constant 0 : i32
    return %arg0, %c0_i32 : i32, i32
  }
  func.func @transform_5(%arg0: i32, %arg1: i32, %arg2: i32) -> (i32, i32) {
    %c0_i32 = arith.constant 0 : i32
    %c0_i32_0 = arith.constant 0 : i32
    return %c0_i32, %arg2 : i32, i32
  }
  func.func @transform_6(%arg0: i32, %arg1: i32, %arg2: i32) -> (i32, i32, i32) {
    %c0_i32 = arith.constant 0 : i32
    %c0_i32_0 = arith.constant 0 : i32
    return %arg1, %arg0, %c0_i32 : i32, i32, i32
  }
  func.func @transform_7(%arg0: i32, %arg1: i32, %arg2: i32) -> (i32, i32, i32) {
    %c0_i32 = arith.constant 0 : i32
    %c0_i32_0 = arith.constant 0 : i32
    return %arg1, %c0_i32, %arg2 : i32, i32, i32
  }
  func.func @transform_8(%arg0: i32, %arg1: i32, %arg2: i32) -> (i32, i32) {
    %c0_i32 = arith.constant 0 : i32
    %c0_i32_0 = arith.constant 0 : i32
    return %arg0, %c0_i32 : i32, i32
  }
}

</mosaic_0001>

<llo_original>
// kernel: tpu_custom_call.1
$region0: #{tpu_custom_call.1}
  #allocation0 [shape = 'u32[]', space=smem, size = 0x4, offset = 0x4, fixed_abs, tag = 'smem constant byte address 0x4 - core index']
  #allocation1 [shape = 'u32[144,128]{1,0:T(1,128)}', space=vmem, size = 0x12000, scoped, tag = 'internal scratch']
  %s0 = inlined_call_operand.vmem [shape: f32[8,32], index: 0, kind: input, shape index: {}]
  %s1 = inlined_call_operand.hbm [shape: f32[8,32], index: 1, kind: input, shape index: {}]
  %s2 = inlined_call_operand.vmem [shape: f32[3,8,32], index: 2, kind: input, shape index: {}]
  %s3 = inlined_call_operand.hbm [shape: f32[3,8,32], index: 3, kind: input, shape index: {}]
  %s4 = inlined_call_operand.vmem [shape: f32[8,1], index: 4, kind: input, shape index: {}]
  %s5 = inlined_call_operand.vmem [shape: f32[1,8], index: 5, kind: input, shape index: {}]
  %s6 = inlined_call_operand.vmem [shape: f32[3,8,1], index: 6, kind: input, shape index: {}]
  %s7 = inlined_call_operand.vmem [shape: f32[3,1,8], index: 7, kind: input, shape index: {}]
  %s8 = inlined_call_operand.vmem [shape: f32[8,1], index: 8, kind: output, shape index: {}]
  %s9 = sld [smem:[#allocation0]]
  $region85: #{tpu_custom_call.1} parent=0
    _
  %s11 = ssub.s32 1, %s9
  %s12 = scalar_select 0, %s11, %s9
  $region1: #{tpu_custom_call.1} parent=0
    #allocation2 [shape = 'u8[4096]{0}', space=vmem, size = 0x1000, scoped, tag = 'input window, operand 1, single buffered']
    #allocation3 [shape = 's32[2]{0}', space=sflag, size = 0x8, scoped, tag = 'scoped memory for tpu_custom_call.1']
    #allocation4 [shape = 'u8[8192]{0}', space=vmem, size = 0x2000, scoped, tag = 'input window, operand 3']
    #allocation5 [shape = 's32[2]{0}', space=sflag, size = 0x8, scoped, tag = 'scoped memory for tpu_custom_call.1']
    %13 = vsyncpa [#allocation3], 0
    %14 = vsyncpa [#allocation5], 0
    %s15 = scalar_lea.sflag [#allocation5], 1
    %16 = vsyncpa %s15, 0
    loop: start=0, step=1, limit=5
    $region2: #{tpu_custom_call.1} parent=1 // loop_pre_header
      _
    $region3: #{tpu_custom_call.1} parent=1 // loop_header
      %s18 = sphi 0, %s22
      %p19 = scmp.ge.s32.totalorder %s18, 5
      %s25 = sphi 0, %s44
      %s26 = sphi 0, %s40
      %s27 = sphi 0, %s36
      %s28 = sphi 0, %s25
      %s29 = sphi 0, %s26
      %s30 = sphi 0, %s27
      %s31 = sphi 0, %s28
      %s32 = sphi 0, %s29
      %s33 = sphi 0, %s30
      %s47 = sphi 0, %s49
      %s50 = sphi 0, %s47
      %s51 = sphi 0, %s50
      %s67 = sphi 0, %s51
      %s73 = sphi 0, %s75
      %s76 = sphi 0, %s73
      %s77 = sphi 0, %s76
      %s93 = sphi 0, %s77
      %s101 = sphi 0, %s103
      %s104 = sphi 0, %s101
      %s105 = sphi 0, %s104
      %s121 = sphi 0, %s105
      %s129 = sphi 0, %s131
      %s132 = sphi 0, %s129
      %s133 = sphi 0, %s132
      %s149 = sphi 0, %s133
      %s155 = sphi 0, %s157
      %s158 = sphi 0, %s155
      %s159 = sphi 0, %s158
      %s175 = sphi 0, %s159
      %s181 = sphi 0, %s183
      %s184 = sphi 0, %s181
      %s185 = sphi 0, %s184
      %s201 = sphi 0, %s185
      %s209 = sphi 0, %s211
      %s212 = sphi 0, %s209
      %s213 = sphi 0, %s212
      %s229 = sphi 0, %s213
      %s237 = sphi 0, %s239
      %s240 = sphi 0, %s237
      %s241 = sphi 0, %s240
      %s257 = sphi 0, %s241
      %s263 = sphi 0, %s265
      %s266 = sphi 0, %s263
      %s267 = sphi 0, %s266
      %s283 = sphi 0, %s267
    $region4: #{tpu_custom_call.1} parent=1 // loop_header_branch
      %21 = sbr.rel (%p19) target = $region8
    $region5: #{tpu_custom_call.1} parent=1 // loop_body
      %s23 = ssub.s32 %s18, 1
      %s24 = ssub.s32 %s18, 2
      %s34 = sadd.s32 1, %s27
      %p35 = scmp.ge.s32.totalorder %s34, 1
      %s36 = scalar_select %p35, 0, %s34
      %s37 = sadd.s32 1, %s26
      %s38 = scalar_select %p35, %s37, %s26
      %p39 = scmp.ge.s32.totalorder %s38, 3
      %s40 = scalar_select %p39, 0, %s38
      %s41 = sadd.s32 1, %s25
      %s42 = scalar_select %p39, %s41, %s25
      %p43 = scmp.ge.s32.totalorder %s42, 1
      %s44 = scalar_select %p43, 0, %s42
      %s45 = ssub.s32 %s25, %s44
      %p46 = scmp.eq.s32.totalorder %s45, 0
      %s48 = sadd.s32 %s47, 1
      %s49 = scalar_select %p46, %s47, %s48
      %p52 = pneg %p46
      %p53 = scmp.eq.s32.totalorder %s18, 2
      %p54 = por %p52, %p53
      %p55 = scmp.ne.s32.totalorder %s47, %s50
      %p56 = scmp.eq.s32.totalorder %s18, 0
      %p57 = por %p55, %p56
      %p58 = scmp.ne.s32.totalorder %s47, %s50
      %p59 = scmp.eq.s32.totalorder %s23, 2
      %p60 = por %p58, %p59
      %p61 = scmp.ne.s32.totalorder %s50, %s51
      %p62 = scmp.eq.s32.totalorder %s23, 0
      %p63 = por %p61, %p62
      %p64 = scmp.ne.s32.totalorder %s50, %s51
      %p65 = scmp.eq.s32.totalorder %s24, 2
      %p66 = por %p64, %p65
      %p68 = scmp.ne.s32.totalorder %s51, %s67
      %p69 = scmp.eq.s32.totalorder %s24, 0
      %p70 = por %p68, %p69
      %s71 = ssub.s32 %s27, %s36
      %p72 = scmp.eq.s32.totalorder %s71, 0
      %s74 = sadd.s32 %s73, 1
      %s75 = scalar_select %p72, %s73, %s74
      %p78 = pneg %p72
      %p79 = scmp.eq.s32.totalorder %s18, 2
      %p80 = por %p78, %p79
      %p81 = scmp.ne.s32.totalorder %s73, %s76
      %p82 = scmp.eq.s32.totalorder %s18, 0
      %p83 = por %p81, %p82
      %p84 = scmp.ne.s32.totalorder %s73, %s76
      %p85 = scmp.eq.s32.totalorder %s23, 2
      %p86 = por %p84, %p85
      %p87 = scmp.ne.s32.totalorder %s76, %s77
      %p88 = scmp.eq.s32.totalorder %s23, 0
      %p89 = por %p87, %p88
      %p90 = scmp.ne.s32.totalorder %s76, %s77
      %p91 = scmp.eq.s32.totalorder %s24, 2
      %p92 = por %p90, %p91
      %p94 = scmp.ne.s32.totalorder %s77, %s93
      %p95 = scmp.eq.s32.totalorder %s24, 0
      %p96 = por %p94, %p95
      %s97 = ssub.s32 %s26, %s40
      %s98 = ssub.s32 %s25, %s44
      %s99 = sor.u32 %s97, %s98
      %p100 = scmp.eq.s32.totalorder %s99, 0
      %s102 = sadd.s32 %s101, 1
      %s103 = scalar_select %p100, %s101, %s102
      %p106 = pneg %p100
      %p107 = scmp.eq.s32.totalorder %s18, 2
      %p108 = por %p106, %p107
      %p109 = scmp.ne.s32.totalorder %s101, %s104
      %p110 = scmp.eq.s32.totalorder %s18, 0
      %p111 = por %p109, %p110
      %p112 = scmp.ne.s32.totalorder %s101, %s104
      %p113 = scmp.eq.s32.totalorder %s23, 2
      %p114 = por %p112, %p113
      %p115 = scmp.ne.s32.totalorder %s104, %s105
      %p116 = scmp.eq.s32.totalorder %s23, 0
      %p117 = por %p115, %p116
      %p118 = scmp.ne.s32.totalorder %s104, %s105
      %p119 = scmp.eq.s32.totalorder %s24, 2
      %p120 = por %p118, %p119
      %p122 = scmp.ne.s32.totalorder %s105, %s121
      %p123 = scmp.eq.s32.totalorder %s24, 0
      %p124 = por %p122, %p123
      %s125 = ssub.s32 %s26, %s40
      %s126 = ssub.s32 %s27, %s36
      %s127 = sor.u32 %s125, %s126
      %p128 = scmp.eq.s32.totalorder %s127, 0
      %s130 = sadd.s32 %s129, 1
      %s131 = scalar_select %p128, %s129, %s130
      %p134 = pneg %p128
      %p135 = scmp.eq.s32.totalorder %s18, 2
      %p136 = por %p134, %p135
      %p137 = scmp.ne.s32.totalorder %s129, %s132
      %p138 = scmp.eq.s32.totalorder %s18, 0
      %p139 = por %p137, %p138
      %p140 = scmp.ne.s32.totalorder %s129, %s132
      %p141 = scmp.eq.s32.totalorder %s23, 2
      %p142 = por %p140, %p141
      %p143 = scmp.ne.s32.totalorder %s132, %s133
      %p144 = scmp.eq.s32.totalorder %s23, 0
      %p145 = por %p143, %p144
      %p146 = scmp.ne.s32.totalorder %s132, %s133
      %p147 = scmp.eq.s32.totalorder %s24, 2
      %p148 = por %p146, %p147
      %p150 = scmp.ne.s32.totalorder %s133, %s149
      %p151 = scmp.eq.s32.totalorder %s24, 0
      %p152 = por %p150, %p151
      %s153 = ssub.s32 %s25, %s44
      %p154 = scmp.eq.s32.totalorder %s153, 0
      %s156 = sadd.s32 %s155, 1
      %s157 = scalar_select %p154, %s155, %s156
      %p160 = pneg %p154
      %p161 = scmp.eq.s32.totalorder %s18, 2
      %p162 = por %p160, %p161
      %p163 = scmp.ne.s32.totalorder %s155, %s158
      %p164 = scmp.eq.s32.totalorder %s18, 0
      %p165 = por %p163, %p164
      %p166 = scmp.ne.s32.totalorder %s155, %s158
      %p167 = scmp.eq.s32.totalorder %s23, 2
      %p168 = por %p166, %p167
      %p169 = scmp.ne.s32.totalorder %s158, %s159
      %p170 = scmp.eq.s32.totalorder %s23, 0
      %p171 = por %p169, %p170
      %p172 = scmp.ne.s32.totalorder %s158, %s159
      %p173 = scmp.eq.s32.totalorder %s24, 2
      %p174 = por %p172, %p173
      %p176 = scmp.ne.s32.totalorder %s159, %s175
      %p177 = scmp.eq.s32.totalorder %s24, 0
      %p178 = por %p176, %p177
      %s179 = ssub.s32 %s27, %s36
      %p180 = scmp.eq.s32.totalorder %s179, 0
      %s182 = sadd.s32 %s181, 1
      %s183 = scalar_select %p180, %s181, %s182
      %p186 = pneg %p180
      %p187 = scmp.eq.s32.totalorder %s18, 2
      %p188 = por %p186, %p187
      %p189 = scmp.ne.s32.totalorder %s181, %s184
      %p190 = scmp.eq.s32.totalorder %s18, 0
      %p191 = por %p189, %p190
      %p192 = scmp.ne.s32.totalorder %s181, %s184
      %p193 = scmp.eq.s32.totalorder %s23, 2
      %p194 = por %p192, %p193
      %p195 = scmp.ne.s32.totalorder %s184, %s185
      %p196 = scmp.eq.s32.totalorder %s23, 0
      %p197 = por %p195, %p196
      %p198 = scmp.ne.s32.totalorder %s184, %s185
      %p199 = scmp.eq.s32.totalorder %s24, 2
      %p200 = por %p198, %p199
      %p202 = scmp.ne.s32.totalorder %s185, %s201
      %p203 = scmp.eq.s32.totalorder %s24, 0
      %p204 = por %p202, %p203
      %s205 = ssub.s32 %s26, %s40
      %s206 = ssub.s32 %s25, %s44
      %s207 = sor.u32 %s205, %s206
      %p208 = scmp.eq.s32.totalorder %s207, 0
      %s210 = sadd.s32 %s209, 1
      %s211 = scalar_select %p208, %s209, %s210
      %p214 = pneg %p208
      %p215 = scmp.eq.s32.totalorder %s18, 2
      %p216 = por %p214, %p215
      %p217 = scmp.ne.s32.totalorder %s209, %s212
      %p218 = scmp.eq.s32.totalorder %s18, 0
      %p219 = por %p217, %p218
      %p220 = scmp.ne.s32.totalorder %s209, %s212
      %p221 = scmp.eq.s32.totalorder %s23, 2
      %p222 = por %p220, %p221
      %p223 = scmp.ne.s32.totalorder %s212, %s213
      %p224 = scmp.eq.s32.totalorder %s23, 0
      %p225 = por %p223, %p224
      %p226 = scmp.ne.s32.totalorder %s212, %s213
      %p227 = scmp.eq.s32.totalorder %s24, 2
      %p228 = por %p226, %p227
      %p230 = scmp.ne.s32.totalorder %s213, %s229
      %p231 = scmp.eq.s32.totalorder %s24, 0
      %p232 = por %p230, %p231
      %s233 = ssub.s32 %s26, %s40
      %s234 = ssub.s32 %s27, %s36
      %s235 = sor.u32 %s233, %s234
      %p236 = scmp.eq.s32.totalorder %s235, 0
      %s238 = sadd.s32 %s237, 1
      %s239 = scalar_select %p236, %s237, %s238
      %p242 = pneg %p236
      %p243 = scmp.eq.s32.totalorder %s18, 2
      %p244 = por %p242, %p243
      %p245 = scmp.ne.s32.totalorder %s237, %s240
      %p246 = scmp.eq.s32.totalorder %s18, 0
      %p247 = por %p245, %p246
      %p248 = scmp.ne.s32.totalorder %s237, %s240
      %p249 = scmp.eq.s32.totalorder %s23, 2
      %p250 = por %p248, %p249
      %p251 = scmp.ne.s32.totalorder %s240, %s241
      %p252 = scmp.eq.s32.totalorder %s23, 0
      %p253 = por %p251, %p252
      %p254 = scmp.ne.s32.totalorder %s240, %s241
      %p255 = scmp.eq.s32.totalorder %s24, 2
      %p256 = por %p254, %p255
      %p258 = scmp.ne.s32.totalorder %s241, %s257
      %p259 = scmp.eq.s32.totalorder %s24, 0
      %p260 = por %p258, %p259
      %s261 = ssub.s32 %s25, %s44
      %p262 = scmp.eq.s32.totalorder %s261, 0
      %s264 = sadd.s32 %s263, 1
      %s265 = scalar_select %p262, %s263, %s264
      %p268 = pneg %p262
      %p269 = scmp.eq.s32.totalorder %s18, 2
      %p270 = por %p268, %p269
      %p271 = scmp.ne.s32.totalorder %s263, %s266
      %p272 = scmp.eq.s32.totalorder %s18, 0
      %p273 = por %p271, %p272
      %p274 = scmp.ne.s32.totalorder %s263, %s266
      %p275 = scmp.eq.s32.totalorder %s23, 2
      %p276 = por %p274, %p275
      %p277 = scmp.ne.s32.totalorder %s266, %s267
      %p278 = scmp.eq.s32.totalorder %s23, 0
      %p279 = por %p277, %p278
      %p280 = scmp.ne.s32.totalorder %s266, %s267
      %p281 = scmp.eq.s32.totalorder %s24, 2
      %p282 = por %p280, %p281
      %p284 = scmp.ne.s32.totalorder %s267, %s283
      %p285 = scmp.eq.s32.totalorder %s24, 0
      %p286 = por %p284, %p285
      %p287 = scmp.le.s32.totalorder 1, %s18
      %p288 = scmp.lt.s32.totalorder %s18, 4
      %p289 = pnand %p287, %p288
      %p290 = pneg %p289
      // Predicated region
      $region9: #{tpu_custom_call.1} parent=5 // pred_check
        _
      $region10: #{tpu_custom_call.1} parent=5 // pred_check_branch
        %292 = sbr.rel (%p289) target = $region12
      $region11: #{tpu_custom_call.1} parent=5 // pred_region
        %s293 = ssub.s32 %s18, 1
        // Predicated region
        $region13: #{tpu_custom_call.1} parent=11 // pred_check
          %p294 = pneg %p63
        $region14: #{tpu_custom_call.1} parent=11 // pred_check_branch
          %296 = sbr.rel (%p294) target = $region16
        $region15: #{tpu_custom_call.1} parent=11 // pred_region
          %p297 = scmp.lt.s32.totalorder %s28, 0
          %s298 = scalar_select %p297, %s28, 0
          %s299 = smul.addr %s298, 8
          %s300 = scalar_lea.vmem %s0, %s299
        $region16: #{tpu_custom_call.1} parent=11 // pred_fallthru
          _
        // Predicated region
        $region17: #{tpu_custom_call.1} parent=11 // pred_check
          %p301 = pneg %p89
        $region18: #{tpu_custom_call.1} parent=11 // pred_check_branch
          %303 = sbr.rel (%p301) target = $region20
        $region19: #{tpu_custom_call.1} parent=11 // pred_region
          %s305 = ssub.s32 128, 128
          %306 = vsyncadd [#allocation3], %s305
          %s307 = smul.addr %s30, 128
          %s308 = scalar_lea.hbm %s1, %s307
          %s310 = sshll.u32 [#allocation2], 4
          %s311 = int_to_ptr.vmem [resolvable:$true] %s310
          %313 = dma.hbm_to_vmem [thread:$0]  %s308, 128, %s311, [#allocation3]
        $region20: #{tpu_custom_call.1} parent=11 // pred_fallthru
          _
        // Predicated region
        $region21: #{tpu_custom_call.1} parent=11 // pred_check
          %p314 = pneg %p171
        $region22: #{tpu_custom_call.1} parent=11 // pred_check_branch
          %316 = sbr.rel (%p314) target = $region24
        $region23: #{tpu_custom_call.1} parent=11 // pred_region
          %p317 = scmp.lt.s32.totalorder %s28, 0
          %s318 = scalar_select %p317, %s28, 0
          %s319 = smul.addr %s318, 8
          %s320 = scalar_lea.vmem %s4, %s319
        $region24: #{tpu_custom_call.1} parent=11 // pred_fallthru
          _
        // Predicated region
        $region25: #{tpu_custom_call.1} parent=11 // pred_check
          %p321 = pneg %p197
        $region26: #{tpu_custom_call.1} parent=11 // pred_check_branch
          %323 = sbr.rel (%p321) target = $region28
        $region27: #{tpu_custom_call.1} parent=11 // pred_region
          %p324 = scmp.lt.s32.totalorder %s30, 0
          %s325 = scalar_select %p324, %s30, 0
          %s326 = scalar_lea.vmem %s5, %s325
        $region28: #{tpu_custom_call.1} parent=11 // pred_fallthru
          _
      $region12: #{tpu_custom_call.1} parent=5 // pred_fallthru
        _
      %p327 = scmp.lt.s32.totalorder %s18, 3
      // Predicated region
      $region29: #{tpu_custom_call.1} parent=5 // pred_check
        %p328 = pneg %p327
      $region30: #{tpu_custom_call.1} parent=5 // pred_check_branch
        %330 = sbr.rel (%p328) target = $region32
      $region31: #{tpu_custom_call.1} parent=5 // pred_region
        // Predicated region
        $region33: #{tpu_custom_call.1} parent=31 // pred_check
          %p331 = pneg %p111
        $region34: #{tpu_custom_call.1} parent=31 // pred_check_branch
          %333 = sbr.rel (%p331) target = $region36
        $region35: #{tpu_custom_call.1} parent=31 // pred_region
          %p334 = scmp.lt.s32.totalorder %s26, 2
          %s335 = scalar_select %p334, %s26, 2
          %p336 = scmp.lt.s32.totalorder %s25, 0
          %s337 = scalar_select %p336, %s25, 0
          %s338 = sadd.s32 %s337, %s335
          %s339 = smul.addr %s338, 8
          %s340 = scalar_lea.vmem %s2, %s339
        $region36: #{tpu_custom_call.1} parent=31 // pred_fallthru
          _
        // Predicated region
        $region37: #{tpu_custom_call.1} parent=31 // pred_check
          %p341 = pneg %p139
        $region38: #{tpu_custom_call.1} parent=31 // pred_check_branch
          %343 = sbr.rel (%p341) target = $region40
        $region39: #{tpu_custom_call.1} parent=31 // pred_region
          %s344 = sand.u32 %s129, 1
          %s345 = scalar_lea.sflag [#allocation5], %s344
          %s346 = sand.u32 %s129, 1
          %s347 = smul.addr %s346, 8
          %s348 = scalar_lea.vmem [#allocation4], %s347
          %s350 = ssub.s32 128, 128
          %351 = vsyncadd %s345, %s350
          %s352 = sadd.s32 %s27, %s26
          %s353 = smul.addr %s352, 128
          %s354 = scalar_lea.hbm %s3, %s353
          %s356 = sshll.u32 %s348, 4
          %s357 = int_to_ptr.vmem [resolvable:$true] %s356
          %359 = dma.hbm_to_vmem [thread:$0]  %s354, 128, %s357, %s345
        $region40: #{tpu_custom_call.1} parent=31 // pred_fallthru
          _
        // Predicated region
        $region41: #{tpu_custom_call.1} parent=31 // pred_check
          %p360 = pneg %p219
        $region42: #{tpu_custom_call.1} parent=31 // pred_check_branch
          %362 = sbr.rel (%p360) target = $region44
        $region43: #{tpu_custom_call.1} parent=31 // pred_region
          %p363 = scmp.lt.s32.totalorder %s26, 2
          %s364 = scalar_select %p363, %s26, 2
          %p365 = scmp.lt.s32.totalorder %s25, 0
          %s366 = scalar_select %p365, %s25, 0
          %s367 = sadd.s32 %s366, %s364
          %s368 = smul.addr %s367, 8
          %s369 = scalar_lea.vmem %s6, %s368
        $region44: #{tpu_custom_call.1} parent=31 // pred_fallthru
          _
        // Predicated region
        $region45: #{tpu_custom_call.1} parent=31 // pred_check
          %p370 = pneg %p247
        $region46: #{tpu_custom_call.1} parent=31 // pred_check_branch
          %372 = sbr.rel (%p370) target = $region48
        $region47: #{tpu_custom_call.1} parent=31 // pred_region
          %p373 = scmp.lt.s32.totalorder %s26, 2
          %s374 = scalar_select %p373, %s26, 2
          %p375 = scmp.lt.s32.totalorder %s27, 0
          %s376 = scalar_select %p375, %s27, 0
          %s377 = sadd.s32 %s376, %s374
          %s378 = scalar_lea.vmem %s7, %s377
        $region48: #{tpu_custom_call.1} parent=31 // pred_fallthru
          _
      $region32: #{tpu_custom_call.1} parent=5 // pred_fallthru
        _
      %p379 = scmp.le.s32.totalorder 1, %s18
      %p380 = scmp.lt.s32.totalorder %s18, 4
      %p381 = pnand %p379, %p380
      %p382 = pneg %p381
      // Predicated region
      $region49: #{tpu_custom_call.1} parent=5 // pred_check
        _
      $region50: #{tpu_custom_call.1} parent=5 // pred_check_branch
        %384 = sbr.rel (%p381) target = $region52
      $region51: #{tpu_custom_call.1} parent=5 // pred_region
        %s385 = ssub.s32 %s18, 1
        // Predicated region
        $region53: #{tpu_custom_call.1} parent=51 // pred_check
          %p386 = pneg %p89
        $region54: #{tpu_custom_call.1} parent=51 // pred_check_branch
          %388 = sbr.rel (%p386) target = $region56
        $region55: #{tpu_custom_call.1} parent=51 // pred_region
          %389 = dma.done [#allocation3], 128
        $region56: #{tpu_custom_call.1} parent=51 // pred_fallthru
          _
        %s390 = sand.u32 %s132, 1
        %s391 = scalar_lea.sflag [#allocation5], %s390
        %s392 = sand.u32 %s132, 1
        %s393 = smul.addr %s392, 8
        %s394 = scalar_lea.vmem [#allocation4], %s393
        // Predicated region
        $region57: #{tpu_custom_call.1} parent=51 // pred_check
          %p395 = pneg %p145
        $region58: #{tpu_custom_call.1} parent=51 // pred_check_branch
          %397 = sbr.rel (%p395) target = $region60
        $region59: #{tpu_custom_call.1} parent=51 // pred_region
          %398 = dma.done %s391, 128
        $region60: #{tpu_custom_call.1} parent=51 // pred_fallthru
          _
        %p399 = scmp.lt.s32.totalorder %s28, 0
        %s400 = scalar_select %p399, %s28, 0
        %s401 = smul.addr %s400, 8
        %s402 = scalar_lea.vmem %s0, %s401
        %p403 = pneg %p63
        %p404 = pneg %p60
        %p405 = pneg %p89
        %p406 = pneg %p86
        %p407 = scmp.lt.s32.totalorder %s29, 2
        %s408 = scalar_select %p407, %s29, 2
        %p409 = scmp.lt.s32.totalorder %s28, 0
        %s410 = scalar_select %p409, %s28, 0
        %s411 = sadd.s32 %s410, %s408
        %s412 = smul.addr %s411, 8
        %s413 = scalar_lea.vmem %s2, %s412
        %p414 = pneg %p117
        %p415 = pneg %p114
        %s416 = sand.u32 %s132, 1
        %s417 = scalar_lea.sflag [#allocation5], %s416
        %s418 = sand.u32 %s132, 1
        %s419 = smul.addr %s418, 8
        %s420 = scalar_lea.vmem [#allocation4], %s419
        %p421 = pneg %p145
        %p422 = pneg %p142
        %p423 = scmp.lt.s32.totalorder %s28, 0
        %s424 = scalar_select %p423, %s28, 0
        %s425 = smul.addr %s424, 8
        %s426 = scalar_lea.vmem %s4, %s425
        %p427 = pneg %p171
        %p428 = pneg %p168
        %p429 = scmp.lt.s32.totalorder %s30, 0
        %s430 = scalar_select %p429, %s30, 0
        %s431 = scalar_lea.vmem %s5, %s430
        %p432 = pneg %p197
        %p433 = pneg %p194
        %p434 = scmp.lt.s32.totalorder %s29, 2
        %s435 = scalar_select %p434, %s29, 2
        %p436 = scmp.lt.s32.totalorder %s28, 0
        %s437 = scalar_select %p436, %s28, 0
        %s438 = sadd.s32 %s437, %s435
        %s439 = smul.addr %s438, 8
        %s440 = scalar_lea.vmem %s6, %s439
        %p441 = pneg %p225
        %p442 = pneg %p222
        %p443 = scmp.lt.s32.totalorder %s29, 2
        %s444 = scalar_select %p443, %s29, 2
        %p445 = scmp.lt.s32.totalorder %s30, 0
        %s446 = scalar_select %p445, %s30, 0
        %s447 = sadd.s32 %s446, %s444
        %s448 = scalar_lea.vmem %s7, %s447
        %p449 = pneg %p253
        %p450 = pneg %p250
        %p451 = pneg %p279
        %p452 = pneg %p276
        %p453 = scmp.lt.s32.totalorder %s28, 0
        %s454 = scalar_select %p453, %s28, 0
        %s455 = smul.addr %s454, 8
        %s456 = scalar_lea.vmem %s8, %s455
        %p457 = scmp.lt.s32.totalorder %s28, 0
        %s458 = scalar_select %p457, %s28, 0
        %s459 = smul.addr %s458, 8
        %s460 = scalar_lea.vmem %s0, %s459
        %p461 = scmp.lt.s32.totalorder %s29, 2
        %s462 = scalar_select %p461, %s29, 2
        %p463 = scmp.lt.s32.totalorder %s28, 0
        %s464 = scalar_select %p463, %s28, 0
        %s465 = sadd.s32 %s464, %s462
        %s466 = smul.addr %s465, 8
        %s467 = scalar_lea.vmem %s2, %s466
        %p468 = scmp.lt.s32.totalorder %s28, 0
        %s469 = scalar_select %p468, %s28, 0
        %s470 = smul.addr %s469, 8
        %s471 = scalar_lea.vmem %s4, %s470
        %p472 = scmp.lt.s32.totalorder %s30, 0
        %s473 = scalar_select %p472, %s30, 0
        %s474 = scalar_lea.vmem %s5, %s473
        %p475 = scmp.lt.s32.totalorder %s29, 2
        %s476 = scalar_select %p475, %s29, 2
        %p477 = scmp.lt.s32.totalorder %s28, 0
        %s478 = scalar_select %p477, %s28, 0
        %s479 = sadd.s32 %s478, %s476
        %s480 = smul.addr %s479, 8
        %s481 = scalar_lea.vmem %s6, %s480
        %p482 = scmp.lt.s32.totalorder %s29, 2
        %s483 = scalar_select %p482, %s29, 2
        %p484 = scmp.lt.s32.totalorder %s30, 0
        %s485 = scalar_select %p484, %s30, 0
        %s486 = sadd.s32 %s485, %s483
        %s487 = scalar_lea.vmem %s7, %s486
        %p488 = scmp.lt.s32.totalorder %s28, 0
        %s489 = scalar_select %p488, %s28, 0
        %s490 = smul.addr %s489, 8
        %s491 = scalar_lea.vmem %s8, %s490
        %p492 = scmp.eq.s32.totalorder %s29, 0
        %p493 = scmp.eq.s32.totalorder %s30, 0
        %p494 = pnand %p492, %p493
        %p495 = pneg %p494
        // Predicated region
        $region61: #{tpu_custom_call.1} parent=51 // pred_check
          _
        $region62: #{tpu_custom_call.1} parent=51 // pred_check_branch
          %497 = sbr.rel (%p494) target = $region64
        $region63: #{tpu_custom_call.1} parent=51 // pred_region
          %vm498 = vcmask 7168
          %499 = vst.msk [vmem:[%s491] sm:$0xff] %vm498, 0.0
        $region64: #{tpu_custom_call.1} parent=51 // pred_fallthru
          _
        %v500 = vld [vmem:[%s460] sm:$0xff]
        %v501 = vld [vmem:[%s467] sm:$0xff]
        %v502 = vld [vmem:[%s394] sm:$0xff]
        %v503 = vld [vmem:[%s471] sm:$0xff]
        %v504 = vld [vmem:[%s474] sm:$0x1]
        %v505 = vld [vmem:[%s481] sm:$0xff]
        %v506 = vld [vmem:[%s487] sm:$0x1]
        %vm507 = vcmask 261120
        %v509 = vsel %vm507, %v501, 0
        %v512 = vsel %vm507, %v502, 0
        %514 = vmatprep.subr.mxu0 0.0
        %515 = vmatpush1.xpose.msra.mxu0 0.0
        %516 = vmatprep.subr.mxu0 0.0
        %517 = vmatpush1.xpose.msra.mxu0 0.0
        %518 = vmatprep.subr.mxu0 0.0
        %519 = vmatpush1.xpose.msra.mxu0 0.0
        %520 = vmatprep.subr.mxu0 0.0
        %521 = vmatpush1.xpose.msra.mxu0 0.0
        %522 = vmatprep.subr.mxu0 0.0
        %523 = vmatpush1.xpose.msra.mxu0 0.0
        %524 = vmatprep.subr.mxu0 0.0
        %525 = vmatpush1.xpose.msra.mxu0 0.0
        %526 = vmatprep.subr.mxu0 0.0
        %527 = vmatpush1.xpose.msra.mxu0 0.0
        %528 = vmatprep.subr.mxu0 0.0
        %529 = vmatpush1.xpose.msra.mxu0 0.0
        %530 = vmatprep.subr.mxu0 0.0
        %531 = vmatpush1.xpose.msra.mxu0 0.0
        %532 = vmatprep.subr.mxu0 0.0
        %533 = vmatpush1.xpose.msra.mxu0 0.0
        %534 = vmatprep.subr.mxu0 0.0
        %535 = vmatpush1.xpose.msra.mxu0 0.0
        %536 = vmatprep.subr.mxu0 0.0
        %537 = vmatpush1.xpose.msra.mxu0 0.0
        %538 = vmatprep.subr.mxu0 0.0
        %539 = vmatpush1.xpose.msra.mxu0 0.0
        %540 = vmatprep.subr.mxu0 0.0
        %541 = vmatpush1.xpose.msra.mxu0 0.0
        %542 = vmatprep.subr.mxu0 0.0
        %543 = vmatpush1.xpose.msra.mxu0 0.0
        %544 = vmatprep.subr.mxu0 0.0
        %545 = vmatpush1.xpose.msra.mxu0 %v512
        %546 = vmatprep.subr.mxu0 0.0
        %547 = vmatpush2.xpose.msra.mxu0 0.0
        %548 = vmatprep.subr.mxu0 0.0
        %549 = vmatpush2.xpose.msra.mxu0 0.0
        %550 = vmatprep.subr.mxu0 0.0
        %551 = vmatpush2.xpose.msra.mxu0 0.0
        %552 = vmatprep.subr.mxu0 0.0
        %553 = vmatpush2.xpose.msra.mxu0 0.0
        %554 = vmatprep.subr.mxu0 0.0
        %555 = vmatpush2.xpose.msra.mxu0 0.0
        %556 = vmatprep.subr.mxu0 0.0
        %557 = vmatpush2.xpose.msra.mxu0 0.0
        %558 = vmatprep.subr.mxu0 0.0
        %559 = vmatpush2.xpose.msra.mxu0 0.0
        %560 = vmatprep.subr.mxu0 0.0
        %561 = vmatpush2.xpose.msra.mxu0 0.0
        %562 = vmatprep.subr.mxu0 0.0
        %563 = vmatpush2.xpose.msra.mxu0 0.0
        %564 = vmatprep.subr.mxu0 0.0
        %565 = vmatpush2.xpose.msra.mxu0 0.0
        %566 = vmatprep.subr.mxu0 0.0
        %567 = vmatpush2.xpose.msra.mxu0 0.0
        %568 = vmatprep.subr.mxu0 0.0
        %569 = vmatpush2.xpose.msra.mxu0 0.0
        %570 = vmatprep.subr.mxu0 0.0
        %571 = vmatpush2.xpose.msra.mxu0 0.0
        %572 = vmatprep.subr.mxu0 0.0
        %573 = vmatpush2.xpose.msra.mxu0 0.0
        %574 = vmatprep.subr.mxu0 0.0
        %575 = vmatpush2.xpose.msra.mxu0 0.0
        %576 = vmatprep.subr.mxu0 0.0
        %577 = vmatpush2.xpose.msra.mxu0 0.0
        %578 = vmatprep.mubr.f32.mxu0 0.0
        %579 = vmatmul.mubr.f32.gmra.mxu0 %v509
        %v580 = vpop.f32.mrf.mxu0
        %v581 = vadd.f32 0.0, %v580
        %v582 = vpop.f32.mrf.mxu0
        %583 = vdwg.mxu0
        %585 = vset.pattern.permute.xlu0 0
        %586 = vperm.xlu0 %585, %v505
        %v587 = vpop.permute.xlu0 %586
        %v589 = vsub.f32 %v581, %v587
        %v591 = vlaneseq
        %v592 = vshrl.u32 %v591, 7
        %v593 = vsub.s32 0, %v592
        %v594 = vrot.slane %v506, %v593
        %v596 = vsub.f32 %v589, %v594
        %v597 = vmin.f32 %v596, 0.0
        %v598 = vmul.f32 %v597, 1.442695
        %v599 = vpow.pop %v598
        %vm600 = vcmask 64512
        %v602 = vsel %vm600, %v599, 0
        %604 = vmatprep.subr.mxu0 0.0
        %605 = vmatpush1.msra.mxu0 0.0
        %606 = vmatprep.subr.mxu0 0.0
        %607 = vmatpush1.msra.mxu0 0.0
        %608 = vmatprep.subr.mxu0 0.0
        %609 = vmatpush1.msra.mxu0 0.0
        %610 = vmatprep.subr.mxu0 0.0
        %611 = vmatpush1.msra.mxu0 0.0
        %612 = vmatprep.subr.mxu0 0.0
        %613 = vmatpush1.msra.mxu0 0.0
        %614 = vmatprep.subr.mxu0 0.0
        %615 = vmatpush1.msra.mxu0 0.0
        %616 = vmatprep.subr.mxu0 0.0
        %617 = vmatpush1.msra.mxu0 0.0
        %618 = vmatprep.subr.mxu0 0.0
        %619 = vmatpush1.msra.mxu0 0.0
        %620 = vmatprep.subr.mxu0 0.0
        %621 = vmatpush1.msra.mxu0 0.0
        %622 = vmatprep.subr.mxu0 0.0
        %623 = vmatpush1.msra.mxu0 0.0
        %624 = vmatprep.subr.mxu0 0.0
        %625 = vmatpush1.msra.mxu0 0.0
        %626 = vmatprep.subr.mxu0 0.0
        %627 = vmatpush1.msra.mxu0 0.0
        %628 = vmatprep.subr.mxu0 0.0
        %629 = vmatpush1.msra.mxu0 0.0
        %630 = vmatprep.subr.mxu0 0.0
        %631 = vmatpush1.msra.mxu0 0.0
        %632 = vmatprep.subr.mxu0 0.0
        %633 = vmatpush1.msra.mxu0 0.0
        %634 = vmatprep.subr.mxu0 0.0
        %635 = vmatpush1.msra.mxu0 1.0
        %636 = vmatprep.subr.mxu0 0.0
        %637 = vmatpush2.msra.mxu0 0.0
        %638 = vmatprep.subr.mxu0 0.0
        %639 = vmatpush2.msra.mxu0 0.0
        %640 = vmatprep.subr.mxu0 0.0
        %641 = vmatpush2.msra.mxu0 0.0
        %642 = vmatprep.subr.mxu0 0.0
        %643 = vmatpush2.msra.mxu0 0.0
        %644 = vmatprep.subr.mxu0 0.0
        %645 = vmatpush2.msra.mxu0 0.0
        %646 = vmatprep.subr.mxu0 0.0
        %647 = vmatpush2.msra.mxu0 0.0
        %648 = vmatprep.subr.mxu0 0.0
        %649 = vmatpush2.msra.mxu0 0.0
        %650 = vmatprep.subr.mxu0 0.0
        %651 = vmatpush2.msra.mxu0 0.0
        %652 = vmatprep.subr.mxu0 0.0
        %653 = vmatpush2.msra.mxu0 0.0
        %654 = vmatprep.subr.mxu0 0.0
        %655 = vmatpush2.msra.mxu0 0.0
        %656 = vmatprep.subr.mxu0 0.0
        %657 = vmatpush2.msra.mxu0 0.0
        %658 = vmatprep.subr.mxu0 0.0
        %659 = vmatpush2.msra.mxu0 0.0
        %660 = vmatprep.subr.mxu0 0.0
        %661 = vmatpush2.msra.mxu0 0.0
        %662 = vmatprep.subr.mxu0 0.0
        %663 = vmatpush2.msra.mxu0 0.0
        %664 = vmatprep.subr.mxu0 0.0
        %665 = vmatpush2.msra.mxu0 0.0
        %666 = vmatprep.subr.mxu0 0.0
        %667 = vmatpush2.msra.mxu0 0.0
        %668 = vmatprep.mubr.f32.mxu0 0.0
        %669 = vmatmul.mubr.f32.gmra.mxu0 %v602
        %v670 = vpop.f32.mrf.mxu0
        %v671 = vadd.f32 0.0, %v670
        %v672 = vpop.f32.mrf.mxu0
        %673 = vdwg.mxu0
        %v675 = vsel %vm507, %v500, 0
        %677 = vmatprep.subr.mxu0 0.0
        %678 = vmatpush1.xpose.msra.mxu0 0.0
        %679 = vmatprep.subr.mxu0 0.0
        %680 = vmatpush1.xpose.msra.mxu0 0.0
        %681 = vmatprep.subr.mxu0 0.0
        %682 = vmatpush1.xpose.msra.mxu0 0.0
        %683 = vmatprep.subr.mxu0 0.0
        %684 = vmatpush1.xpose.msra.mxu0 0.0
        %685 = vmatprep.subr.mxu0 0.0
        %686 = vmatpush1.xpose.msra.mxu0 0.0
        %687 = vmatprep.subr.mxu0 0.0
        %688 = vmatpush1.xpose.msra.mxu0 0.0
        %689 = vmatprep.subr.mxu0 0.0
        %690 = vmatpush1.xpose.msra.mxu0 0.0
        %691 = vmatprep.subr.mxu0 0.0
        %692 = vmatpush1.xpose.msra.mxu0 0.0
        %693 = vmatprep.subr.mxu0 0.0
        %694 = vmatpush1.xpose.msra.mxu0 0.0
        %695 = vmatprep.subr.mxu0 0.0
        %696 = vmatpush1.xpose.msra.mxu0 0.0
        %697 = vmatprep.subr.mxu0 0.0
        %698 = vmatpush1.xpose.msra.mxu0 0.0
        %699 = vmatprep.subr.mxu0 0.0
        %700 = vmatpush1.xpose.msra.mxu0 0.0
        %701 = vmatprep.subr.mxu0 0.0
        %702 = vmatpush1.xpose.msra.mxu0 0.0
        %703 = vmatprep.subr.mxu0 0.0
        %704 = vmatpush1.xpose.msra.mxu0 0.0
        %705 = vmatprep.subr.mxu0 0.0
        %706 = vmatpush1.xpose.msra.mxu0 0.0
        %707 = vmatprep.subr.mxu0 0.0
        %708 = vmatpush1.xpose.msra.mxu0 %v512
        %709 = vmatprep.subr.mxu0 0.0
        %710 = vmatpush2.xpose.msra.mxu0 0.0
        %711 = vmatprep.subr.mxu0 0.0
        %712 = vmatpush2.xpose.msra.mxu0 0.0
        %713 = vmatprep.subr.mxu0 0.0
        %714 = vmatpush2.xpose.msra.mxu0 0.0
        %715 = vmatprep.subr.mxu0 0.0
        %716 = vmatpush2.xpose.msra.mxu0 0.0
        %717 = vmatprep.subr.mxu0 0.0
        %718 = vmatpush2.xpose.msra.mxu0 0.0
        %719 = vmatprep.subr.mxu0 0.0
        %720 = vmatpush2.xpose.msra.mxu0 0.0
        %721 = vmatprep.subr.mxu0 0.0
        %722 = vmatpush2.xpose.msra.mxu0 0.0
        %723 = vmatprep.subr.mxu0 0.0
        %724 = vmatpush2.xpose.msra.mxu0 0.0
        %725 = vmatprep.subr.mxu0 0.0
        %726 = vmatpush2.xpose.msra.mxu0 0.0
        %727 = vmatprep.subr.mxu0 0.0
        %728 = vmatpush2.xpose.msra.mxu0 0.0
        %729 = vmatprep.subr.mxu0 0.0
        %730 = vmatpush2.xpose.msra.mxu0 0.0
        %731 = vmatprep.subr.mxu0 0.0
        %732 = vmatpush2.xpose.msra.mxu0 0.0
        %733 = vmatprep.subr.mxu0 0.0
        %734 = vmatpush2.xpose.msra.mxu0 0.0
        %735 = vmatprep.subr.mxu0 0.0
        %736 = vmatpush2.xpose.msra.mxu0 0.0
        %737 = vmatprep.subr.mxu0 0.0
        %738 = vmatpush2.xpose.msra.mxu0 0.0
        %739 = vmatprep.subr.mxu0 0.0
        %740 = vmatpush2.xpose.msra.mxu0 0.0
        %741 = vmatprep.mubr.f32.mxu0 0.0
        %742 = vmatmul.mubr.f32.gmra.mxu0 %v675
        %v743 = vpop.f32.mrf.mxu0
        %v744 = vadd.f32 0.0, %v743
        %v745 = vpop.f32.mrf.mxu0
        %746 = vdwg.mxu0
        %748 = vset.pattern.permute.xlu0 0
        %749 = vperm.xlu0 %748, %v503
        %v750 = vpop.permute.xlu0 %749
        %v752 = vsub.f32 %v744, %v750
        %v753 = vsub.f32 %v752, %v594
        %v754 = vmin.f32 %v753, 0.0
        %v755 = vmul.f32 %v754, 1.442695
        %v756 = vpow.pop %v755
        %v758 = vsel %vm600, %v756, 0
        %760 = vmatprep.subr.mxu0 0.0
        %761 = vmatpush1.msra.mxu0 0.0
        %762 = vmatprep.subr.mxu0 0.0
        %763 = vmatpush1.msra.mxu0 0.0
        %764 = vmatprep.subr.mxu0 0.0
        %765 = vmatpush1.msra.mxu0 0.0
        %766 = vmatprep.subr.mxu0 0.0
        %767 = vmatpush1.msra.mxu0 0.0
        %768 = vmatprep.subr.mxu0 0.0
        %769 = vmatpush1.msra.mxu0 0.0
        %770 = vmatprep.subr.mxu0 0.0
        %771 = vmatpush1.msra.mxu0 0.0
        %772 = vmatprep.subr.mxu0 0.0
        %773 = vmatpush1.msra.mxu0 0.0
        %774 = vmatprep.subr.mxu0 0.0
        %775 = vmatpush1.msra.mxu0 0.0
        %776 = vmatprep.subr.mxu0 0.0
        %777 = vmatpush1.msra.mxu0 0.0
        %778 = vmatprep.subr.mxu0 0.0
        %779 = vmatpush1.msra.mxu0 0.0
        %780 = vmatprep.subr.mxu0 0.0
        %781 = vmatpush1.msra.mxu0 0.0
        %782 = vmatprep.subr.mxu0 0.0
        %783 = vmatpush1.msra.mxu0 0.0
        %784 = vmatprep.subr.mxu0 0.0
        %785 = vmatpush1.msra.mxu0 0.0
        %786 = vmatprep.subr.mxu0 0.0
        %787 = vmatpush1.msra.mxu0 0.0
        %788 = vmatprep.subr.mxu0 0.0
        %789 = vmatpush1.msra.mxu0 0.0
        %790 = vmatprep.subr.mxu0 0.0
        %791 = vmatpush1.msra.mxu0 1.0
        %792 = vmatprep.subr.mxu0 0.0
        %793 = vmatpush2.msra.mxu0 0.0
        %794 = vmatprep.subr.mxu0 0.0
        %795 = vmatpush2.msra.mxu0 0.0
        %796 = vmatprep.subr.mxu0 0.0
        %797 = vmatpush2.msra.mxu0 0.0
        %798 = vmatprep.subr.mxu0 0.0
        %799 = vmatpush2.msra.mxu0 0.0
        %800 = vmatprep.subr.mxu0 0.0
        %801 = vmatpush2.msra.mxu0 0.0
        %802 = vmatprep.subr.mxu0 0.0
        %803 = vmatpush2.msra.mxu0 0.0
        %804 = vmatprep.subr.mxu0 0.0
        %805 = vmatpush2.msra.mxu0 0.0
        %806 = vmatprep.subr.mxu0 0.0
        %807 = vmatpush2.msra.mxu0 0.0
        %808 = vmatprep.subr.mxu0 0.0
        %809 = vmatpush2.msra.mxu0 0.0
        %810 = vmatprep.subr.mxu0 0.0
        %811 = vmatpush2.msra.mxu0 0.0
        %812 = vmatprep.subr.mxu0 0.0
        %813 = vmatpush2.msra.mxu0 0.0
        %814 = vmatprep.subr.mxu0 0.0
        %815 = vmatpush2.msra.mxu0 0.0
        %816 = vmatprep.subr.mxu0 0.0
        %817 = vmatpush2.msra.mxu0 0.0
        %818 = vmatprep.subr.mxu0 0.0
        %819 = vmatpush2.msra.mxu0 0.0
        %820 = vmatprep.subr.mxu0 0.0
        %821 = vmatpush2.msra.mxu0 0.0
        %822 = vmatprep.subr.mxu0 0.0
        %823 = vmatpush2.msra.mxu0 0.0
        %824 = vmatprep.mubr.f32.mxu0 0.0
        %825 = vmatmul.mubr.f32.gmra.mxu0 %v758
        %v826 = vpop.f32.mrf.mxu0
        %v827 = vadd.f32 0.0, %v826
        %v828 = vpop.f32.mrf.mxu0
        %829 = vdwg.mxu0
        %v830 = vmul.f32 %v827, 2.0
        %v831 = vsub.f32 %v671, %v830
        // Predicated region
        $region65: #{tpu_custom_call.1} parent=51 // pred_check
          %p832 = pneg %p492
        $region66: #{tpu_custom_call.1} parent=51 // pred_check_branch
          %834 = sbr.rel (%p832) target = $region68
        $region67: #{tpu_custom_call.1} parent=51 // pred_region
          %v835 = vld [vmem:[#allocation2] sm:$0xff]
          %v836 = vld [vmem:[%s491] sm:$0xff]
          %v838 = vsel %vm507, %v835, 0
          %840 = vmatprep.subr.mxu0 0.0
          %841 = vmatpush1.xpose.msra.mxu0 0.0
          %842 = vmatprep.subr.mxu0 0.0
          %843 = vmatpush1.xpose.msra.mxu0 0.0
          %844 = vmatprep.subr.mxu0 0.0
          %845 = vmatpush1.xpose.msra.mxu0 0.0
          %846 = vmatprep.subr.mxu0 0.0
          %847 = vmatpush1.xpose.msra.mxu0 0.0
          %848 = vmatprep.subr.mxu0 0.0
          %849 = vmatpush1.xpose.msra.mxu0 0.0
          %850 = vmatprep.subr.mxu0 0.0
          %851 = vmatpush1.xpose.msra.mxu0 0.0
          %852 = vmatprep.subr.mxu0 0.0
          %853 = vmatpush1.xpose.msra.mxu0 0.0
          %854 = vmatprep.subr.mxu0 0.0
          %855 = vmatpush1.xpose.msra.mxu0 0.0
          %856 = vmatprep.subr.mxu0 0.0
          %857 = vmatpush1.xpose.msra.mxu0 0.0
          %858 = vmatprep.subr.mxu0 0.0
          %859 = vmatpush1.xpose.msra.mxu0 0.0
          %860 = vmatprep.subr.mxu0 0.0
          %861 = vmatpush1.xpose.msra.mxu0 0.0
          %862 = vmatprep.subr.mxu0 0.0
          %863 = vmatpush1.xpose.msra.mxu0 0.0
          %864 = vmatprep.subr.mxu0 0.0
          %865 = vmatpush1.xpose.msra.mxu0 0.0
          %866 = vmatprep.subr.mxu0 0.0
          %867 = vmatpush1.xpose.msra.mxu0 0.0
          %868 = vmatprep.subr.mxu0 0.0
          %869 = vmatpush1.xpose.msra.mxu0 0.0
          %870 = vmatprep.subr.mxu0 0.0
          %871 = vmatpush1.xpose.msra.mxu0 %v838
          %872 = vmatprep.subr.mxu0 0.0
          %873 = vmatpush2.xpose.msra.mxu0 0.0
          %874 = vmatprep.subr.mxu0 0.0
          %875 = vmatpush2.xpose.msra.mxu0 0.0
          %876 = vmatprep.subr.mxu0 0.0
          %877 = vmatpush2.xpose.msra.mxu0 0.0
          %878 = vmatprep.subr.mxu0 0.0
          %879 = vmatpush2.xpose.msra.mxu0 0.0
          %880 = vmatprep.subr.mxu0 0.0
          %881 = vmatpush2.xpose.msra.mxu0 0.0
          %882 = vmatprep.subr.mxu0 0.0
          %883 = vmatpush2.xpose.msra.mxu0 0.0
          %884 = vmatprep.subr.mxu0 0.0
          %885 = vmatpush2.xpose.msra.mxu0 0.0
          %886 = vmatprep.subr.mxu0 0.0
          %887 = vmatpush2.xpose.msra.mxu0 0.0
          %888 = vmatprep.subr.mxu0 0.0
          %889 = vmatpush2.xpose.msra.mxu0 0.0
          %890 = vmatprep.subr.mxu0 0.0
          %891 = vmatpush2.xpose.msra.mxu0 0.0
          %892 = vmatprep.subr.mxu0 0.0
          %893 = vmatpush2.xpose.msra.mxu0 0.0
          %894 = vmatprep.subr.mxu0 0.0
          %895 = vmatpush2.xpose.msra.mxu0 0.0
          %896 = vmatprep.subr.mxu0 0.0
          %897 = vmatpush2.xpose.msra.mxu0 0.0
          %898 = vmatprep.subr.mxu0 0.0
          %899 = vmatpush2.xpose.msra.mxu0 0.0
          %900 = vmatprep.subr.mxu0 0.0
          %901 = vmatpush2.xpose.msra.mxu0 0.0
          %902 = vmatprep.subr.mxu0 0.0
          %903 = vmatpush2.xpose.msra.mxu0 0.0
          %904 = vmatprep.mubr.f32.mxu0 0.0
          %905 = vmatmul.mubr.f32.gmra.mxu0 %v675
          %v906 = vpop.f32.mrf.mxu0
          %v907 = vadd.f32 0.0, %v906
          %v908 = vpop.f32.mrf.mxu0
          %909 = vdwg.mxu0
          %v910 = vsub.f32 %v907, %v750
          %v912 = vlaneseq
          %v913 = vshrl.u32 %v912, 7
          %v914 = vsub.s32 0, %v913
          %v915 = vrot.slane %v504, %v914
          %v917 = vsub.f32 %v910, %v915
          %v918 = vmin.f32 %v917, 0.0
          %v919 = vmul.f32 %v918, 1.442695
          %v920 = vpow.pop %v919
          %v922 = vsel %vm600, %v920, 0
          %924 = vmatprep.subr.mxu0 0.0
          %925 = vmatpush1.msra.mxu0 0.0
          %926 = vmatprep.subr.mxu0 0.0
          %927 = vmatpush1.msra.mxu0 0.0
          %928 = vmatprep.subr.mxu0 0.0
          %929 = vmatpush1.msra.mxu0 0.0
          %930 = vmatprep.subr.mxu0 0.0
          %931 = vmatpush1.msra.mxu0 0.0
          %932 = vmatprep.subr.mxu0 0.0
          %933 = vmatpush1.msra.mxu0 0.0
          %934 = vmatprep.subr.mxu0 0.0
          %935 = vmatpush1.msra.mxu0 0.0
          %936 = vmatprep.subr.mxu0 0.0
          %937 = vmatpush1.msra.mxu0 0.0
          %938 = vmatprep.subr.mxu0 0.0
          %939 = vmatpush1.msra.mxu0 0.0
          %940 = vmatprep.subr.mxu0 0.0
          %941 = vmatpush1.msra.mxu0 0.0
          %942 = vmatprep.subr.mxu0 0.0
          %943 = vmatpush1.msra.mxu0 0.0
          %944 = vmatprep.subr.mxu0 0.0
          %945 = vmatpush1.msra.mxu0 0.0
          %946 = vmatprep.subr.mxu0 0.0
          %947 = vmatpush1.msra.mxu0 0.0
          %948 = vmatprep.subr.mxu0 0.0
          %949 = vmatpush1.msra.mxu0 0.0
          %950 = vmatprep.subr.mxu0 0.0
          %951 = vmatpush1.msra.mxu0 0.0
          %952 = vmatprep.subr.mxu0 0.0
          %953 = vmatpush1.msra.mxu0 0.0
          %954 = vmatprep.subr.mxu0 0.0
          %955 = vmatpush1.msra.mxu0 1.0
          %956 = vmatprep.subr.mxu0 0.0
          %957 = vmatpush2.msra.mxu0 0.0
          %958 = vmatprep.subr.mxu0 0.0
          %959 = vmatpush2.msra.mxu0 0.0
          %960 = vmatprep.subr.mxu0 0.0
          %961 = vmatpush2.msra.mxu0 0.0
          %962 = vmatprep.subr.mxu0 0.0
          %963 = vmatpush2.msra.mxu0 0.0
          %964 = vmatprep.subr.mxu0 0.0
          %965 = vmatpush2.msra.mxu0 0.0
          %966 = vmatprep.subr.mxu0 0.0
          %967 = vmatpush2.msra.mxu0 0.0
          %968 = vmatprep.subr.mxu0 0.0
          %969 = vmatpush2.msra.mxu0 0.0
          %970 = vmatprep.subr.mxu0 0.0
          %971 = vmatpush2.msra.mxu0 0.0
          %972 = vmatprep.subr.mxu0 0.0
          %973 = vmatpush2.msra.mxu0 0.0
          %974 = vmatprep.subr.mxu0 0.0
          %975 = vmatpush2.msra.mxu0 0.0
          %976 = vmatprep.subr.mxu0 0.0
          %977 = vmatpush2.msra.mxu0 0.0
          %978 = vmatprep.subr.mxu0 0.0
          %979 = vmatpush2.msra.mxu0 0.0
          %980 = vmatprep.subr.mxu0 0.0
          %981 = vmatpush2.msra.mxu0 0.0
          %982 = vmatprep.subr.mxu0 0.0
          %983 = vmatpush2.msra.mxu0 0.0
          %984 = vmatprep.subr.mxu0 0.0
          %985 = vmatpush2.msra.mxu0 0.0
          %986 = vmatprep.subr.mxu0 0.0
          %987 = vmatpush2.msra.mxu0 0.0
          %988 = vmatprep.mubr.f32.mxu0 0.0
          %989 = vmatmul.mubr.f32.gmra.mxu0 %v922
          %v990 = vpop.f32.mrf.mxu0
          %v991 = vadd.f32 0.0, %v990
          %v992 = vpop.f32.mrf.mxu0
          %993 = vdwg.mxu0
          %v994 = vmul.f32 %v991, 3.0
          %v995 = vadd.f32 %v831, %v994
          %v996 = vadd.f32 %v836, %v995
          %vm997 = vcmask 7168
          %998 = vst.msk [vmem:[%s491] sm:$0xff] %vm997, %v996
        $region68: #{tpu_custom_call.1} parent=51 // pred_fallthru
          _
        %p999 = scmp.ne.s32.totalorder %s29, 0
        // Predicated region
        $region69: #{tpu_custom_call.1} parent=51 // pred_check
          %p1000 = pneg %p999
        $region70: #{tpu_custom_call.1} parent=51 // pred_check_branch
          %1002 = sbr.rel (%p1000) target = $region72
        $region71: #{tpu_custom_call.1} parent=51 // pred_region
          %v1003 = vld [vmem:[%s491] sm:$0xff]
          %v1004 = vadd.f32 %v1003, %v831
          %vm1005 = vcmask 7168
          %1006 = vst.msk [vmem:[%s491] sm:$0xff] %vm1005, %v1004
        $region72: #{tpu_custom_call.1} parent=51 // pred_fallthru
          _
        %p1007 = scmp.lt.s32.totalorder %s28, 0
        %s1008 = scalar_select %p1007, %s28, 0
        %s1009 = smul.addr %s1008, 8
        %s1010 = scalar_lea.vmem %s8, %s1009
        // Predicated region
        $region73: #{tpu_custom_call.1} parent=51 // pred_check
          %p1011 = pneg %p276
        $region74: #{tpu_custom_call.1} parent=51 // pred_check_branch
          %1013 = sbr.rel (%p1011) target = $region76
        $region75: #{tpu_custom_call.1} parent=51 // pred_region
          _
        $region76: #{tpu_custom_call.1} parent=51 // pred_fallthru
          _
        // Predicated region
        $region77: #{tpu_custom_call.1} parent=51 // pred_check
          %p1014 = pneg %p276
        $region78: #{tpu_custom_call.1} parent=51 // pred_check_branch
          %1016 = sbr.rel (%p1014) target = $region80
        $region79: #{tpu_custom_call.1} parent=51 // pred_region
          %p1017 = scmp.lt.s32.totalorder %s28, 0
          %s1018 = scalar_select %p1017, %s28, 0
          %s1019 = smul.addr %s1018, 8
          %s1020 = scalar_lea.vmem %s8, %s1019
        $region80: #{tpu_custom_call.1} parent=51 // pred_fallthru
          _
      $region52: #{tpu_custom_call.1} parent=5 // pred_fallthru
        _
      %p1021 = scmp.le.s32.totalorder 2, %s18
      // Predicated region
      $region81: #{tpu_custom_call.1} parent=5 // pred_check
        %p1022 = pneg %p1021
      $region82: #{tpu_custom_call.1} parent=5 // pred_check_branch
        %1024 = sbr.rel (%p1022) target = $region84
      $region83: #{tpu_custom_call.1} parent=5 // pred_region
        %s1025 = ssub.s32 %s18, 2
      $region84: #{tpu_custom_call.1} parent=5 // pred_fallthru
        _
    $region6: #{tpu_custom_call.1} parent=1 // loop_footer
      %s22 = sadd.s32 1, %s18
    $region7: #{tpu_custom_call.1} parent=1 // loop_footer_branch
      %17 = sbr.rel target = $region3
    $region8: #{tpu_custom_call.1} parent=1 // loop_exit
      _
    %1026 = vsyncpa [#allocation3], 1
    %s1027 = scalar_lea.sflag [#allocation3], 1
    %1028 = vsyncpa %s1027, 1
    %1029 = vsyncpa [#allocation5], 1
    %s1030 = scalar_lea.sflag [#allocation5], 1
    %1031 = vsyncpa %s1030, 1

</llo_original>
